<compile_context>
chip_gen: v7x
topology: tpu7x:2x2x1
jax: 0.10.0
libtpu: 0.0.40
codegen_flags: <defaults>
</compile_context>

<pallas_src>
import functools

import jax
import jax.numpy as jnp
from jax.experimental import pallas as pl
from jax.experimental.pallas import tpu as pltpu


def _round_up(n, m):
    return ((n + m - 1) // m) * m


def _critic_kernel(*refs, num_hidden, matmul_dtype):
    """refs = (xT, w1, b1, ..., wH, bH, w_out, out).

    xT:    (feat_in, batch_tile)   -- batch on the lane axis
    w_i:   (out_i, in_i)           -- PyTorch nn.Linear.weight layout
    b_i:   (out_i, 1)
    w_out: (1, last_hidden)        -- PyTorch dense_out.weight layout
    out:   (1, batch_tile)
    """
    xT_ref = refs[0]
    out_ref = refs[-1]
    w_out_ref = refs[-2]

    h = xT_ref[...].astype(jnp.float32)                 # (feat, batch_tile)
    for li in range(num_hidden):
        w = refs[1 + 2 * li][...]                       # (out_i, in_i)
        b = refs[2 + 2 * li][...]                       # (out_i, 1)
        z = jnp.dot(w.astype(matmul_dtype), h.astype(matmul_dtype),
                    preferred_element_type=jnp.float32)  # (out_i, batch_tile)
        h = jnp.tanh(z + b.astype(jnp.float32))          # f32 VPU/EUP epilogue

    # Output head (no bias): (1, feat) @ (feat, batch_tile) -> (1, batch_tile).
    logits = jnp.dot(w_out_ref[...].astype(jnp.float32), h,
                     preferred_element_type=jnp.float32)

    # sigmoid(z) = 0.5 * (tanh(z/2) + 1): single EUP op, no overflow corner case.
    out_ref[...] = (0.5 * (jnp.tanh(0.5 * logits) + 1.0)).astype(out_ref.dtype)


def critic_forward(x, weights, biases, w_out_row, *, batch_tile=None,
                   matmul_dtype=jnp.float32, interpret=False):
    """Critic forward pass.

    x:          (B, latent_dim) float32.
    weights[i]: (out_i, in_i)   -- PyTorch nn.Linear.weight as-is.
    biases[i]:  (out_i,)        -- PyTorch nn.Linear.bias as-is.
    w_out_row:  (1, last_hidden) (dense_out.weight, no bias).
    Returns (B, 1) float32 probabilities.
    """
    B, latent_dim = x.shape
    num_hidden = len(weights)

    if batch_tile is None:
        # Large tiles amortize the ~0.35 us/step pipeline overhead; even block
        # count so the "parallel" grid axis splits evenly across v7x's 2 TCs.
        nb = max(2, pl.cdiv(B, 4096))
        nb = _round_up(nb, 2)
        batch_tile = max(128, min(4096, _round_up(pl.cdiv(B, nb), 128)))
    batch_tile = _round_up(int(batch_tile), 128)

    num_blocks = pl.cdiv(B, batch_tile)
    b_pad = num_blocks * batch_tile
    if b_pad != B:
        x = jnp.pad(x, ((0, b_pad - B), (0, 0)))
    xT = x.T                                             # (latent_dim, b_pad)

    # x^T streamed along the lane (batch) axis; weights/biases resident in VMEM
    # via full-array blocks with constant index maps.
    in_specs = [pl.BlockSpec((latent_dim, batch_tile), lambda i: (0, i))]
    operands = [xT]
    for w, b in zip(weights, biases):
        b2d = b.reshape(-1, 1)                           # (out_i, 1)
        in_specs.append(pl.BlockSpec(w.shape, lambda i: (0, 0)))
        in_specs.append(pl.BlockSpec(b2d.shape, lambda i: (0, 0)))
        operands.append(w)
        operands.append(b2d)
    in_specs.append(pl.BlockSpec(w_out_row.shape, lambda i: (0, 0)))
    operands.append(w_out_row)

    # Lane-dense output row: block (1, batch_tile) on a (1, b_pad) array.
    # Each grid step owns its own (8,128) hardware tiles -> no cross-step
    # writeback overlap (the bug in the previous version).
    out_spec = pl.BlockSpec((1, batch_tile), lambda i: (0, i))

    kernel = functools.partial(_critic_kernel, num_hidden=num_hidden,
                               matmul_dtype=matmul_dtype)

    out_row = pl.pallas_call(
        kernel,
        out_shape=jax.ShapeDtypeStruct((1, b_pad), jnp.float32),
        grid_spec=pltpu.PrefetchScalarGridSpec(
            num_scalar_prefetch=0,
            grid=(num_blocks,),
            in_specs=in_specs,
            out_specs=out_spec,
        ),
        compiler_params=pltpu.CompilerParams(
            dimension_semantics=("parallel",),
        ),
        interpret=interpret,
    )(*operands)

    return out_row[0, :B].reshape(B, 1)


def reference_forward(x, weights, biases, w_out_row):
    h = x
    for w, b in zip(weights, biases):
        h = jnp.tanh(h @ w.T + b)
    return jax.nn.sigmoid(h @ w_out_row.T)


def _make_params(key, latent_dim, hidden_neurons):
    dense_neurons = [latent_dim] + list(hidden_neurons)
    n_layers = len(dense_neurons) - 1
    keys = jax.random.split(key, 2 * n_layers + 2)
    weights, biases = [], []
    ki = 0
    for i in range(n_layers):
        fan_in, fan_out = dense_neurons[i], dense_neurons[i + 1]
        scale = 1.0 / jnp.sqrt(fan_in)
        # PyTorch nn.Linear layout: weight (out, in), bias (out,)
        w = jax.random.uniform(keys[ki], (fan_out, fan_in), jnp.float32,
                               minval=-scale, maxval=scale); ki += 1
        b = jax.random.uniform(keys[ki], (fan_out,), jnp.float32,
                               minval=-scale, maxval=scale); ki += 1
        weights.append(w)
        biases.append(b)
    scale = 1.0 / jnp.sqrt(dense_neurons[-1])
    w_out_row = jax.random.uniform(keys[ki], (1, dense_neurons[-1]), jnp.float32,
                                   minval=-scale, maxval=scale); ki += 1
    return weights, biases, w_out_row, keys[ki]


if __name__ == "__main__":
    latent_dim = 32
    hidden_neurons = [64, 32]

    key = jax.random.PRNGKey(0)
    weights, biases, w_out_row, xkey = _make_params(key, latent_dim,
                                                    hidden_neurons)

    # 1) Small batch: single grid step, padded to one 128-lane tile.
    x_small = jax.random.normal(xkey, (8, latent_dim), jnp.float32)
    out_small = jax.block_until_ready(
        critic_forward(x_small, weights, biases, w_out_row))
    ref_small = reference_forward(x_small, weights, biases, w_out_row)
    assert out_small.shape == (8, 1)
    assert jnp.allclose(out_small, ref_small, atol=1e-3, rtol=1e-3)

    # 2) Multi-block with auto tile (even block count: bt=256, 2 steps).
    x_big = jax.random.normal(jax.random.PRNGKey(1), (300, latent_dim),
                              jnp.float32)
    ref_big = reference_forward(x_big, weights, biases, w_out_row)
    out_auto = jax.block_until_ready(
        critic_forward(x_big, weights, biases, w_out_row))
    assert out_auto.shape == (300, 1)
    assert jnp.allclose(out_auto, ref_big, atol=1e-3, rtol=1e-3)

    # 3) Explicit small tile: 3 grid steps + padding (previously failing case).
    out_b128 = jax.block_until_ready(
        critic_forward(x_big, weights, biases, w_out_row, batch_tile=128))
    assert out_b128.shape == (300, 1)
    assert jnp.allclose(out_b128, ref_big, atol=1e-3, rtol=1e-3)

    # 4) bf16 MXU operands (v6e/v7x fast path); elementwise math stays f32.
    out_bf16 = jax.block_until_ready(
        critic_forward(x_big, weights, biases, w_out_row,
                       matmul_dtype=jnp.bfloat16))
    assert jnp.allclose(out_bf16, ref_big, atol=1e-2, rtol=1e-2)

    print("KERNEL_OK")
</pallas_src>

<mosaic_0001>
module attributes {stable_mosaic.version = 11 : i64} {
  func.func @_critic_kernel(%arg0: i32, %arg1: memref<32x128xf32, #tpu.memory_space<vmem>>, %arg2: memref<64x32xf32, #tpu.memory_space<vmem>>, %arg3: memref<64x1xf32, #tpu.memory_space<vmem>>, %arg4: memref<32x64xf32, #tpu.memory_space<vmem>>, %arg5: memref<32x1xf32, #tpu.memory_space<vmem>>, %arg6: memref<1x32xf32, #tpu.memory_space<vmem>>, %arg7: memref<1x128xf32, #tpu.memory_space<vmem>>) attributes {dimension_semantics = [#tpu.dimension_semantics<parallel>], iteration_bounds = array<i64: 1>, scalar_prefetch = 0 : i64, scratch_operands = 0 : i64, tpu.core_type = #tpu.core_type<tc>, window_params = [{transform_indices = @transform_0, window_bounds = array<i64: 32, 128>}, {pipeline_mode = #tpu.pipeline_mode<synchronous>, transform_indices = @transform_1, window_bounds = array<i64: 64, 32>}, {pipeline_mode = #tpu.pipeline_mode<synchronous>, transform_indices = @transform_2, window_bounds = array<i64: 64, 1>}, {pipeline_mode = #tpu.pipeline_mode<synchronous>, transform_indices = @transform_3, window_bounds = array<i64: 32, 64>}, {pipeline_mode = #tpu.pipeline_mode<synchronous>, transform_indices = @transform_4, window_bounds = array<i64: 32, 1>}, {pipeline_mode = #tpu.pipeline_mode<synchronous>, transform_indices = @transform_5, window_bounds = array<i64: 1, 32>}, {transform_indices = @transform_6, window_bounds = array<i64: 1, 128>}]} {
    %c0 = arith.constant 0 : index
    %c0_0 = arith.constant 0 : index
    %0 = vector.load %arg1[%c0, %c0_0] : memref<32x128xf32, #tpu.memory_space<vmem>>, vector<32x128xf32>
    %c0_1 = arith.constant 0 : index
    %c0_2 = arith.constant 0 : index
    %1 = vector.load %arg2[%c0_1, %c0_2] : memref<64x32xf32, #tpu.memory_space<vmem>>, vector<64x32xf32>
    %c0_3 = arith.constant 0 : index
    %c0_4 = arith.constant 0 : index
    %2 = vector.load %arg3[%c0_3, %c0_4] : memref<64x1xf32, #tpu.memory_space<vmem>>, vector<64x1xf32>
    %cst = arith.constant dense<0.000000e+00> : vector<64x128xf32>
    %3 = tpu.matmul %1, %0, %cst {dimension_numbers = #tpu.dot_dimension_numbers<[1], [0], [0], [1], [0, 0, 1, 1], [], []>} : vector<64x32xf32>, vector<32x128xf32>, vector<64x128xf32> -> vector<64x128xf32>
    %4 = vector.broadcast %2 : vector<64x1xf32> to vector<64x128xf32>
    %5 = arith.addf %3, %4 : vector<64x128xf32>
    %6 = math.tanh %5 : vector<64x128xf32>
    %c0_5 = arith.constant 0 : index
    %c0_6 = arith.constant 0 : index
    %7 = vector.load %arg4[%c0_5, %c0_6] : memref<32x64xf32, #tpu.memory_space<vmem>>, vector<32x64xf32>
    %c0_7 = arith.constant 0 : index
    %c0_8 = arith.constant 0 : index
    %8 = vector.load %arg5[%c0_7, %c0_8] : memref<32x1xf32, #tpu.memory_space<vmem>>, vector<32x1xf32>
    %cst_9 = arith.constant dense<0.000000e+00> : vector<32x128xf32>
    %9 = tpu.matmul %7, %6, %cst_9 {dimension_numbers = #tpu.dot_dimension_numbers<[1], [0], [0], [1], [0, 0, 1, 1], [], []>} : vector<32x64xf32>, vector<64x128xf32>, vector<32x128xf32> -> vector<32x128xf32>
    %10 = vector.broadcast %8 : vector<32x1xf32> to vector<32x128xf32>
    %11 = arith.addf %9, %10 : vector<32x128xf32>
    %12 = math.tanh %11 : vector<32x128xf32>
    %c0_10 = arith.constant 0 : index
    %c0_11 = arith.constant 0 : index
    %13 = vector.load %arg6[%c0_10, %c0_11] : memref<1x32xf32, #tpu.memory_space<vmem>>, vector<1x32xf32>
    %cst_12 = arith.constant dense<0.000000e+00> : vector<1x128xf32>
    %14 = tpu.matmul %13, %12, %cst_12 {dimension_numbers = #tpu.dot_dimension_numbers<[1], [0], [0], [1], [0, 0, 1, 1], [], []>} : vector<1x32xf32>, vector<32x128xf32>, vector<1x128xf32> -> vector<1x128xf32>
    %cst_13 = arith.constant 5.000000e-01 : f32
    %15 = vector.broadcast %cst_13 : f32 to vector<1x128xf32>
    %16 = arith.mulf %15, %14 : vector<1x128xf32>
    %17 = math.tanh %16 : vector<1x128xf32>
    %cst_14 = arith.constant 1.000000e+00 : f32
    %18 = vector.broadcast %cst_14 : f32 to vector<1x128xf32>
    %19 = arith.addf %17, %18 : vector<1x128xf32>
    %cst_15 = arith.constant 5.000000e-01 : f32
    %20 = vector.broadcast %cst_15 : f32 to vector<1x128xf32>
    %21 = arith.mulf %20, %19 : vector<1x128xf32>
    %c0_16 = arith.constant 0 : index
    %c0_17 = arith.constant 0 : index
    %22 = vector.load %arg7[%c0_16, %c0_17] : memref<1x128xf32, #tpu.memory_space<vmem>>, vector<1x128xf32>
    tpu.vector_store %arg7[%c0_16, %c0_17], %21 {strides = array<i32>} : memref<1x128xf32, #tpu.memory_space<vmem>>, vector<1x128xf32>,
    return
  }
  func.func @transform_0(%arg0: i32) -> (i32, i32) {
    %c0_i32 = arith.constant 0 : i32
    %c0_i32_0 = arith.constant 0 : i32
    return %c0_i32, %arg0 : i32, i32
  }
  func.func @transform_1(%arg0: i32) -> (i32, i32) {
    %c0_i32 = arith.constant 0 : i32
    %c0_i32_0 = arith.constant 0 : i32
    %c0_i32_1 = arith.constant 0 : i32
    return %c0_i32, %c0_i32_0 : i32, i32
  }
  func.func @transform_2(%arg0: i32) -> (i32, i32) {
    %c0_i32 = arith.constant 0 : i32
    %c0_i32_0 = arith.constant 0 : i32
    %c0_i32_1 = arith.constant 0 : i32
    return %c0_i32, %c0_i32_0 : i32, i32
  }
  func.func @transform_3(%arg0: i32) -> (i32, i32) {
    %c0_i32 = arith.constant 0 : i32
    %c0_i32_0 = arith.constant 0 : i32
    %c0_i32_1 = arith.constant 0 : i32
    return %c0_i32, %c0_i32_0 : i32, i32
  }
  func.func @transform_4(%arg0: i32) -> (i32, i32) {
    %c0_i32 = arith.constant 0 : i32
    %c0_i32_0 = arith.constant 0 : i32
    %c0_i32_1 = arith.constant 0 : i32
    return %c0_i32, %c0_i32_0 : i32, i32
  }
  func.func @transform_5(%arg0: i32) -> (i32, i32) {
    %c0_i32 = arith.constant 0 : i32
    %c0_i32_0 = arith.constant 0 : i32
    %c0_i32_1 = arith.constant 0 : i32
    return %c0_i32, %c0_i32_0 : i32, i32
  }
  func.func @transform_6(%arg0: i32) -> (i32, i32) {
    %c0_i32 = arith.constant 0 : i32
    %c0_i32_0 = arith.constant 0 : i32
    return %c0_i32, %arg0 : i32, i32
  }
}

</mosaic_0001>

<llo_original>
// kernel: tpu_custom_call.1
$region0: #{tpu_custom_call.1}
  #allocation0 [shape = 'u32[]', space=smem, size = 0x4, offset = 0x4, fixed_abs, tag = 'smem constant byte address 0x4 - core index']
  #allocation1 [shape = 'u32[144,128]{1,0:T(1,128)}', space=vmem, size = 0x12000, scoped, tag = 'internal scratch']
  %s0 = inlined_call_operand.vmem [shape: f32[32,128], index: 0, kind: input, shape index: {}]
  %s1 = inlined_call_operand.vmem [shape: f32[64,32], index: 1, kind: input, shape index: {}]
  %s2 = inlined_call_operand.vmem [shape: f32[64,1], index: 2, kind: input, shape index: {}]
  %s3 = inlined_call_operand.vmem [shape: f32[32,64], index: 3, kind: input, shape index: {}]
  %s4 = inlined_call_operand.vmem [shape: f32[32,1], index: 4, kind: input, shape index: {}]
  %s5 = inlined_call_operand.vmem [shape: f32[1,32], index: 5, kind: input, shape index: {}]
  %s6 = inlined_call_operand.hbm [shape: f32[1,128], index: 6, kind: output, shape index: {}]
  %s7 = sld [smem:[#allocation0]]
  $region34: #{tpu_custom_call.1} parent=0
    _
  %s9 = ssub.s32 1, %s7
  %s10 = scalar_select 0, %s9, %s7
  $region1: #{tpu_custom_call.1} parent=0
    #allocation2 [shape = 'u8[512]{0}', space=vmem, size = 0x400, scoped, tag = 'output window, operand 0, single buffered']
    #allocation3 [shape = 's32[1]{0}', space=sflag, size = 0x4, scoped, tag = 'scoped memory for tpu_custom_call.1']
    %11 = vsyncpa [#allocation3], 0
    // Predicated region
    $region2: #{tpu_custom_call.1} parent=1 // pred_check
      _
    $region3: #{tpu_custom_call.1} parent=1 // pred_check_branch
      %13 = sbr.rel (0) target = $region5
    $region4: #{tpu_custom_call.1} parent=1 // pred_region
      _
    $region5: #{tpu_custom_call.1} parent=1 // pred_fallthru
      _
    // Predicated region
    $region6: #{tpu_custom_call.1} parent=1 // pred_check
      _
    $region7: #{tpu_custom_call.1} parent=1 // pred_check_branch
      %15 = sbr.rel (0) target = $region9
    $region8: #{tpu_custom_call.1} parent=1 // pred_region
      _
    $region9: #{tpu_custom_call.1} parent=1 // pred_fallthru
      _
    // Predicated region
    $region10: #{tpu_custom_call.1} parent=1 // pred_check
      _
    $region11: #{tpu_custom_call.1} parent=1 // pred_check_branch
      %17 = sbr.rel (0) target = $region13
    $region12: #{tpu_custom_call.1} parent=1 // pred_region
      _
    $region13: #{tpu_custom_call.1} parent=1 // pred_fallthru
      _
    // Predicated region
    $region14: #{tpu_custom_call.1} parent=1 // pred_check
      _
    $region15: #{tpu_custom_call.1} parent=1 // pred_check_branch
      %19 = sbr.rel (0) target = $region17
    $region16: #{tpu_custom_call.1} parent=1 // pred_region
      _
    $region17: #{tpu_custom_call.1} parent=1 // pred_fallthru
      _
    // Predicated region
    $region18: #{tpu_custom_call.1} parent=1 // pred_check
      _
    $region19: #{tpu_custom_call.1} parent=1 // pred_check_branch
      %21 = sbr.rel (0) target = $region21
    $region20: #{tpu_custom_call.1} parent=1 // pred_region
      _
    $region21: #{tpu_custom_call.1} parent=1 // pred_fallthru
      _
    // Predicated region
    $region22: #{tpu_custom_call.1} parent=1 // pred_check
      _
    $region23: #{tpu_custom_call.1} parent=1 // pred_check_branch
      %23 = sbr.rel (0) target = $region25
    $region24: #{tpu_custom_call.1} parent=1 // pred_region
      _
    $region25: #{tpu_custom_call.1} parent=1 // pred_fallthru
      _
    %v24 = vld [vmem:[%s0] sm:$0xff]
    %v25 = vld [vmem:[%s0 + $0x8] sm:$0xff]
    %v26 = vld [vmem:[%s0 + $0x10] sm:$0xff]
    %v27 = vld [vmem:[%s0 + $0x18] sm:$0xff]
    %v28 = vld [vmem:[%s1] sm:$0xff]
    %v29 = vld [vmem:[%s1 + $0x8] sm:$0xff]
    %v30 = vld [vmem:[%s1 + $0x10] sm:$0xff]
    %v31 = vld [vmem:[%s1 + $0x18] sm:$0xff]
    %v32 = vld [vmem:[%s1 + $0x20] sm:$0xff]
    %v33 = vld [vmem:[%s1 + $0x28] sm:$0xff]
    %v34 = vld [vmem:[%s1 + $0x30] sm:$0xff]
    %v35 = vld [vmem:[%s1 + $0x38] sm:$0xff]
    %v36 = vld [vmem:[%s2] sm:$0xff]
    %v37 = vld [vmem:[%s2 + $0x8] sm:$0xff]
    %v38 = vld [vmem:[%s2 + $0x10] sm:$0xff]
    %v39 = vld [vmem:[%s2 + $0x18] sm:$0xff]
    %v40 = vld [vmem:[%s2 + $0x20] sm:$0xff]
    %v41 = vld [vmem:[%s2 + $0x28] sm:$0xff]
    %v42 = vld [vmem:[%s2 + $0x30] sm:$0xff]
    %v43 = vld [vmem:[%s2 + $0x38] sm:$0xff]
    %45 = vset.pattern.permute.xlu0 0
    %46 = vperm.xlu0 %45, %v36
    %v47 = vpop.permute.xlu0 %46
    %50 = vset.pattern.permute.xlu0 0
    %51 = vperm.xlu0 %50, %v37
    %v52 = vpop.permute.xlu0 %51
    %55 = vset.pattern.permute.xlu0 0
    %56 = vperm.xlu0 %55, %v38
    %v57 = vpop.permute.xlu0 %56
    %60 = vset.pattern.permute.xlu0 0
    %61 = vperm.xlu0 %60, %v39
    %v62 = vpop.permute.xlu0 %61
    %65 = vset.pattern.permute.xlu0 0
    %66 = vperm.xlu0 %65, %v40
    %v67 = vpop.permute.xlu0 %66
    %70 = vset.pattern.permute.xlu0 0
    %71 = vperm.xlu0 %70, %v41
    %v72 = vpop.permute.xlu0 %71
    %75 = vset.pattern.permute.xlu0 0
    %76 = vperm.xlu0 %75, %v42
    %v77 = vpop.permute.xlu0 %76
    %80 = vset.pattern.permute.xlu0 0
    %81 = vperm.xlu0 %80, %v43
    %v82 = vpop.permute.xlu0 %81
    %vm84 = vcmask 261120
    %v86 = vsel %vm84, %v28, 0
    %v89 = vsel %vm84, %v29, 0
    %v92 = vsel %vm84, %v30, 0
    %v95 = vsel %vm84, %v31, 0
    %v98 = vsel %vm84, %v32, 0
    %v101 = vsel %vm84, %v33, 0
    %v104 = vsel %vm84, %v34, 0
    %v107 = vsel %vm84, %v35, 0
    %109 = vmatprep.subr.mxu0 0.0
    %110 = vmatpush1.msra.mxu0 %v24
    %111 = vmatprep.subr.mxu0 0.0
    %112 = vmatpush1.msra.mxu0 %v25
    %113 = vmatprep.subr.mxu0 0.0
    %114 = vmatpush1.msra.mxu0 %v26
    %115 = vmatprep.subr.mxu0 0.0
    %116 = vmatpush1.msra.mxu0 %v27
    %117 = vmatprep.subr.mxu0 0.0
    %118 = vmatpush1.msra.mxu0 0.0
    %119 = vmatprep.subr.mxu0 0.0
    %120 = vmatpush1.msra.mxu0 0.0
    %121 = vmatprep.subr.mxu0 0.0
    %122 = vmatpush1.msra.mxu0 0.0
    %123 = vmatprep.subr.mxu0 0.0
    %124 = vmatpush1.msra.mxu0 0.0
    %125 = vmatprep.subr.mxu0 0.0
    %126 = vmatpush1.msra.mxu0 0.0
    %127 = vmatprep.subr.mxu0 0.0
    %128 = vmatpush1.msra.mxu0 0.0
    %129 = vmatprep.subr.mxu0 0.0
    %130 = vmatpush1.msra.mxu0 0.0
    %131 = vmatprep.subr.mxu0 0.0
    %132 = vmatpush1.msra.mxu0 0.0
    %133 = vmatprep.subr.mxu0 0.0
    %134 = vmatpush1.msra.mxu0 0.0
    %135 = vmatprep.subr.mxu0 0.0
    %136 = vmatpush1.msra.mxu0 0.0
    %137 = vmatprep.subr.mxu0 0.0
    %138 = vmatpush1.msra.mxu0 0.0
    %139 = vmatprep.subr.mxu0 0.0
    %140 = vmatpush1.msra.mxu0 0.0
    %141 = vmatprep.subr.mxu0 0.0
    %142 = vmatpush1.msra.mxu0 0.0
    %143 = vmatprep.subr.mxu0 0.0
    %144 = vmatpush1.msra.mxu0 0.0
    %145 = vmatprep.subr.mxu0 0.0
    %146 = vmatpush1.msra.mxu0 0.0
    %147 = vmatprep.subr.mxu0 0.0
    %148 = vmatpush1.msra.mxu0 0.0
    %149 = vmatprep.subr.mxu0 0.0
    %150 = vmatpush1.msra.mxu0 0.0
    %151 = vmatprep.subr.mxu0 0.0
    %152 = vmatpush1.msra.mxu0 0.0
    %153 = vmatprep.subr.mxu0 0.0
    %154 = vmatpush1.msra.mxu0 0.0
    %155 = vmatprep.subr.mxu0 0.0
    %156 = vmatpush1.msra.mxu0 0.0
    %157 = vmatprep.subr.mxu0 0.0
    %158 = vmatpush1.msra.mxu0 0.0
    %159 = vmatprep.subr.mxu0 0.0
    %160 = vmatpush1.msra.mxu0 0.0
    %161 = vmatprep.subr.mxu0 0.0
    %162 = vmatpush1.msra.mxu0 0.0
    %163 = vmatprep.subr.mxu0 0.0
    %164 = vmatpush1.msra.mxu0 0.0
    %165 = vmatprep.subr.mxu0 0.0
    %166 = vmatpush1.msra.mxu0 0.0
    %167 = vmatprep.subr.mxu0 0.0
    %168 = vmatpush1.msra.mxu0 0.0
    %169 = vmatprep.subr.mxu0 0.0
    %170 = vmatpush1.msra.mxu0 0.0
    %171 = vmatprep.subr.mxu0 0.0
    %172 = vmatpush1.msra.mxu0 0.0
    %173 = vmatprep.mubr.f32.mxu0 0.0
    %174 = vmatmul.mubr.f32.gmra.mrb[0].mxu0 %v86
    %v175 = vpop.f32.mrb[0].mxu0
    %v176 = vadd.f32 %v47, %v175
    %v177 = vpop.f32.mrb[0].mxu0
    %178 = vmatprep.mubr.f32.mxu0 0.0
    %179 = vmatmul.mubr.f32.gmra.mrb[0].mxu0 %v89
    %v180 = vpop.f32.mrb[0].mxu0
    %v181 = vadd.f32 %v52, %v180
    %v182 = vpop.f32.mrb[0].mxu0
    %183 = vmatprep.mubr.f32.mxu0 0.0
    %184 = vmatmul.mubr.f32.gmra.mrb[0].mxu0 %v92
    %v185 = vpop.f32.mrb[0].mxu0
    %v186 = vadd.f32 %v57, %v185
    %v187 = vpop.f32.mrb[0].mxu0
    %188 = vmatprep.mubr.f32.mxu0 0.0
    %189 = vmatmul.mubr.f32.gmra.mrb[0].mxu0 %v95
    %v190 = vpop.f32.mrb[0].mxu0
    %v191 = vadd.f32 %v62, %v190
    %v192 = vpop.f32.mrb[0].mxu0
    %193 = vmatprep.mubr.f32.mxu0 0.0
    %194 = vmatmul.mubr.f32.gmra.mrb[0].mxu0 %v98
    %v195 = vpop.f32.mrb[0].mxu0
    %v196 = vadd.f32 %v67, %v195
    %v197 = vpop.f32.mrb[0].mxu0
    %198 = vmatprep.mubr.f32.mxu0 0.0
    %199 = vmatmul.mubr.f32.gmra.mrb[0].mxu0 %v101
    %v200 = vpop.f32.mrb[0].mxu0
    %v201 = vadd.f32 %v72, %v200
    %v202 = vpop.f32.mrb[0].mxu0
    %203 = vmatprep.mubr.f32.mxu0 0.0
    %204 = vmatmul.mubr.f32.gmra.mrb[0].mxu0 %v104
    %v205 = vpop.f32.mrb[0].mxu0
    %v206 = vadd.f32 %v77, %v205
    %v207 = vpop.f32.mrb[0].mxu0
    %208 = vmatprep.mubr.f32.mxu0 0.0
    %209 = vmatmul.mubr.f32.gmra.mrb[0].mxu0 %v107
    %v210 = vpop.f32.mrb[0].mxu0
    %v211 = vadd.f32 %v82, %v210
    %v212 = vpop.f32.mrb[0].mxu0
    %213 = vdwg.mxu0
    %v214 = vtanh.pop %v176
    %v215 = vtanh.pop %v181
    %v216 = vtanh.pop %v186
    %v217 = vtanh.pop %v191
    %v218 = vtanh.pop %v196
    %v219 = vtanh.pop %v201
    %v220 = vtanh.pop %v206
    %v221 = vtanh.pop %v211
    %v222 = vld [vmem:[%s3] sm:$0xff]
    %v223 = vld [vmem:[%s3 + $0x8] sm:$0xff]
    %v224 = vld [vmem:[%s3 + $0x10] sm:$0xff]
    %v225 = vld [vmem:[%s3 + $0x18] sm:$0xff]
    %v226 = vld [vmem:[%s4] sm:$0xff]
    %v227 = vld [vmem:[%s4 + $0x8] sm:$0xff]
    %v228 = vld [vmem:[%s4 + $0x10] sm:$0xff]
    %v229 = vld [vmem:[%s4 + $0x18] sm:$0xff]
    %231 = vset.pattern.permute.xlu0 0
    %232 = vperm.xlu0 %231, %v226
    %v233 = vpop.permute.xlu0 %232
    %236 = vset.pattern.permute.xlu0 0
    %237 = vperm.xlu0 %236, %v227
    %v238 = vpop.permute.xlu0 %237
    %241 = vset.pattern.permute.xlu0 0
    %242 = vperm.xlu0 %241, %v228
    %v243 = vpop.permute.xlu0 %242
    %246 = vset.pattern.permute.xlu0 0
    %247 = vperm.xlu0 %246, %v229
    %v248 = vpop.permute.xlu0 %247
    %vm250 = vcmask 523264
    %v252 = vsel %vm250, %v222, 0
    %v255 = vsel %vm250, %v223, 0
    %v258 = vsel %vm250, %v224, 0
    %v261 = vsel %vm250, %v225, 0
    %263 = vmatprep.subr.mxu0 0.0
    %264 = vmatpush1.msra.mxu0 %v214
    %265 = vmatprep.subr.mxu0 0.0
    %266 = vmatpush1.msra.mxu0 %v215
    %267 = vmatprep.subr.mxu0 0.0
    %268 = vmatpush1.msra.mxu0 %v216
    %269 = vmatprep.subr.mxu0 0.0
    %270 = vmatpush1.msra.mxu0 %v217
    %271 = vmatprep.subr.mxu0 0.0
    %272 = vmatpush1.msra.mxu0 %v218
    %273 = vmatprep.subr.mxu0 0.0
    %274 = vmatpush1.msra.mxu0 %v219
    %275 = vmatprep.subr.mxu0 0.0
    %276 = vmatpush1.msra.mxu0 %v220
    %277 = vmatprep.subr.mxu0 0.0
    %278 = vmatpush1.msra.mxu0 %v221
    %279 = vmatprep.subr.mxu0 0.0
    %280 = vmatpush1.msra.mxu0 0.0
    %281 = vmatprep.subr.mxu0 0.0
    %282 = vmatpush1.msra.mxu0 0.0
    %283 = vmatprep.subr.mxu0 0.0
    %284 = vmatpush1.msra.mxu0 0.0
    %285 = vmatprep.subr.mxu0 0.0
    %286 = vmatpush1.msra.mxu0 0.0
    %287 = vmatprep.subr.mxu0 0.0
    %288 = vmatpush1.msra.mxu0 0.0
    %289 = vmatprep.subr.mxu0 0.0
    %290 = vmatpush1.msra.mxu0 0.0
    %291 = vmatprep.subr.mxu0 0.0
    %292 = vmatpush1.msra.mxu0 0.0
    %293 = vmatprep.subr.mxu0 0.0
    %294 = vmatpush1.msra.mxu0 0.0
    %295 = vmatprep.subr.mxu0 0.0
    %296 = vmatpush1.msra.mxu0 0.0
    %297 = vmatprep.subr.mxu0 0.0
    %298 = vmatpush1.msra.mxu0 0.0
    %299 = vmatprep.subr.mxu0 0.0
    %300 = vmatpush1.msra.mxu0 0.0
    %301 = vmatprep.subr.mxu0 0.0
    %302 = vmatpush1.msra.mxu0 0.0
    %303 = vmatprep.subr.mxu0 0.0
    %304 = vmatpush1.msra.mxu0 0.0
    %305 = vmatprep.subr.mxu0 0.0
    %306 = vmatpush1.msra.mxu0 0.0
    %307 = vmatprep.subr.mxu0 0.0
    %308 = vmatpush1.msra.mxu0 0.0
    %309 = vmatprep.subr.mxu0 0.0
    %310 = vmatpush1.msra.mxu0 0.0
    %311 = vmatprep.subr.mxu0 0.0
    %312 = vmatpush1.msra.mxu0 0.0
    %313 = vmatprep.subr.mxu0 0.0
    %314 = vmatpush1.msra.mxu0 0.0
    %315 = vmatprep.subr.mxu0 0.0
    %316 = vmatpush1.msra.mxu0 0.0
    %317 = vmatprep.subr.mxu0 0.0
    %318 = vmatpush1.msra.mxu0 0.0
    %319 = vmatprep.subr.mxu0 0.0
    %320 = vmatpush1.msra.mxu0 0.0
    %321 = vmatprep.subr.mxu0 0.0
    %322 = vmatpush1.msra.mxu0 0.0
    %323 = vmatprep.subr.mxu0 0.0
    %324 = vmatpush1.msra.mxu0 0.0
    %325 = vmatprep.subr.mxu0 0.0
    %326 = vmatpush1.msra.mxu0 0.0
    %327 = vmatprep.mubr.f32.mxu0 0.0
    %328 = vmatmul.mubr.f32.gmra.mrb[0].mxu0 %v252
    %v329 = vpop.f32.mrb[0].mxu0
    %v330 = vadd.f32 %v233, %v329
    %v331 = vpop.f32.mrb[0].mxu0
    %332 = vmatprep.mubr.f32.mxu0 0.0
    %333 = vmatmul.mubr.f32.gmra.mrb[0].mxu0 %v255
    %v334 = vpop.f32.mrb[0].mxu0
    %v335 = vadd.f32 %v238, %v334
    %v336 = vpop.f32.mrb[0].mxu0
    %337 = vmatprep.mubr.f32.mxu0 0.0
    %338 = vmatmul.mubr.f32.gmra.mrb[0].mxu0 %v258
    %v339 = vpop.f32.mrb[0].mxu0
    %v340 = vadd.f32 %v243, %v339
    %v341 = vpop.f32.mrb[0].mxu0
    %342 = vmatprep.mubr.f32.mxu0 0.0
    %343 = vmatmul.mubr.f32.gmra.mrb[0].mxu0 %v261
    %v344 = vpop.f32.mrb[0].mxu0
    %v345 = vadd.f32 %v248, %v344
    %v346 = vpop.f32.mrb[0].mxu0
    %347 = vdwg.mxu0
    %v348 = vtanh.pop %v330
    %v349 = vtanh.pop %v335
    %v350 = vtanh.pop %v340
    %v351 = vtanh.pop %v345
    %v352 = vld [vmem:[%s5] sm:$0x1]
    %v354 = vsel %vm84, %v352, 0
    %356 = vmatprep.subr.mxu0 0.0
    %357 = vmatpush1.msra.mxu0 %v348
    %358 = vmatprep.subr.mxu0 0.0
    %359 = vmatpush1.msra.mxu0 %v349
    %360 = vmatprep.subr.mxu0 0.0
    %361 = vmatpush1.msra.mxu0 %v350
    %362 = vmatprep.subr.mxu0 0.0
    %363 = vmatpush1.msra.mxu0 %v351
    %364 = vmatprep.subr.mxu0 0.0
    %365 = vmatpush1.msra.mxu0 0.0
    %366 = vmatprep.subr.mxu0 0.0
    %367 = vmatpush1.msra.mxu0 0.0
    %368 = vmatprep.subr.mxu0 0.0
    %369 = vmatpush1.msra.mxu0 0.0
    %370 = vmatprep.subr.mxu0 0.0
    %371 = vmatpush1.msra.mxu0 0.0
    %372 = vmatprep.subr.mxu0 0.0
    %373 = vmatpush1.msra.mxu0 0.0
    %374 = vmatprep.subr.mxu0 0.0
    %375 = vmatpush1.msra.mxu0 0.0
    %376 = vmatprep.subr.mxu0 0.0
    %377 = vmatpush1.msra.mxu0 0.0
    %378 = vmatprep.subr.mxu0 0.0
    %379 = vmatpush1.msra.mxu0 0.0
    %380 = vmatprep.subr.mxu0 0.0
    %381 = vmatpush1.msra.mxu0 0.0
    %382 = vmatprep.subr.mxu0 0.0
    %383 = vmatpush1.msra.mxu0 0.0
    %384 = vmatprep.subr.mxu0 0.0
    %385 = vmatpush1.msra.mxu0 0.0
    %386 = vmatprep.subr.mxu0 0.0
    %387 = vmatpush1.msra.mxu0 0.0
    %388 = vmatprep.subr.mxu0 0.0
    %389 = vmatpush1.msra.mxu0 0.0
    %390 = vmatprep.subr.mxu0 0.0
    %391 = vmatpush1.msra.mxu0 0.0
    %392 = vmatprep.subr.mxu0 0.0
    %393 = vmatpush1.msra.mxu0 0.0
    %394 = vmatprep.subr.mxu0 0.0
    %395 = vmatpush1.msra.mxu0 0.0
    %396 = vmatprep.subr.mxu0 0.0
    %397 = vmatpush1.msra.mxu0 0.0
    %398 = vmatprep.subr.mxu0 0.0
    %399 = vmatpush1.msra.mxu0 0.0
    %400 = vmatprep.subr.mxu0 0.0
    %401 = vmatpush1.msra.mxu0 0.0
    %402 = vmatprep.subr.mxu0 0.0
    %403 = vmatpush1.msra.mxu0 0.0
    %404 = vmatprep.subr.mxu0 0.0
    %405 = vmatpush1.msra.mxu0 0.0
    %406 = vmatprep.subr.mxu0 0.0
    %407 = vmatpush1.msra.mxu0 0.0
    %408 = vmatprep.subr.mxu0 0.0
    %409 = vmatpush1.msra.mxu0 0.0
    %410 = vmatprep.subr.mxu0 0.0
    %411 = vmatpush1.msra.mxu0 0.0
    %412 = vmatprep.subr.mxu0 0.0
    %413 = vmatpush1.msra.mxu0 0.0
    %414 = vmatprep.subr.mxu0 0.0
    %415 = vmatpush1.msra.mxu0 0.0
    %416 = vmatprep.subr.mxu0 0.0
    %417 = vmatpush1.msra.mxu0 0.0
    %418 = vmatprep.subr.mxu0 0.0
    %419 = vmatpush1.msra.mxu0 0.0
    %420 = vmatprep.mubr.f32.mxu0 0.0
    %421 = vmatmul.mubr.f32.gmra.mrb[0].mxu0 %v354
    %v422 = vpop.f32.mrb[0].mxu0
    %v423 = vadd.f32 0.0, %v422
    %v424 = vpop.f32.mrb[0].mxu0
    %425 = vdwg.mxu0
    %v426 = vmul.f32 %v423, 0.5
    %v427 = vtanh.pop %v426
    %v428 = vadd.f32 %v427, 1.0
    %v429 = vmul.f32 %v428, 0.5
    %430 = vst [vmem:[#allocation2] sm:$0x1] %v429
    // Predicated region
    $region26: #{tpu_custom_call.1} parent=1 // pred_check
      _
    $region27: #{tpu_custom_call.1} parent=1 // pred_check_branch
      %432 = sbr.rel (0) target = $region29
    $region28: #{tpu_custom_call.1} parent=1 // pred_region
      %s434 = ssub.s32 16, 16
      %435 = vsyncadd [#allocation3], %s434
      %s437 = sshll.u32 [#allocation2], 4
      %s438 = int_to_ptr.vmem [resolvable:$true] %s437
      %440 = dma.vmem_to_hbm [thread:$0]  %s438, 16, %s6, [#allocation3]
    $region29: #{tpu_custom_call.1} parent=1 // pred_fallthru
      _
    // Predicated region
    $region30: #{tpu_custom_call.1} parent=1 // pred_check
      _
    $region31: #{tpu_custom_call.1} parent=1 // pred_check_branch
      %442 = sbr.rel (0) target = $region33
    $region32: #{tpu_custom_call.1} parent=1 // pred_region
      %443 = dma.done [#allocation3], 16
    $region33: #{tpu_custom_call.1} parent=1 // pred_fallthru
      _
    %444 = vsyncpa [#allocation3], 1

</llo_original>
